<compile_context>
chip_gen: v5e
topology: v5e:2x2
jax: 0.10.0
libtpu: 0.0.40
codegen_flags: <defaults>
</compile_context>

<pallas_src>
import jax
import jax.numpy as jnp
from jax.experimental import pallas as pl
from jax.experimental.pallas import tpu as pltpu


def _inv1x1_kernel(w_ref, z_ref, o_ref):
    # w_ref: (C, C) float32, VMEM-resident across the whole grid.
    # z_ref / o_ref: (Bblk, C, TT) tiles (Bblk is small and statically unrolled).
    # TODO(synk): in full WaveGlow, fuse the neighboring affine-coupling
    # scale/bias elementwise work into this body to save another HBM pass.
    w = w_ref[...]
    for b in range(z_ref.shape[0]):
        o_ref[b] = jnp.dot(
            w, z_ref[b], preferred_element_type=jnp.float32
        ).astype(o_ref.dtype)


def _round_down_128(x):
    return max(128, (x // 128) * 128)


def _choose_tiles(B, C, T, dtype_bytes, cap_bytes):
    """Pick (Bblk, TT, nB, nT) so each grid step moves ~cap_bytes per buffer."""
    tt_cap = _round_down_128(cap_bytes // (C * dtype_bytes))
    if T <= tt_cap:
        TT = T          # one full-T block per step (full-dim block is always legal)
    else:
        TT = tt_cap     # lane-dense multiple of 128, <= T; cdiv grid handles the ragged tail
    nT = pl.cdiv(T, TT)

    Bblk = 1
    if nT == 1:
        # Whole time axis fits in one tile: block several batch rows per step
        # to keep the per-step transfer near the budget (amortizes the ~0.35us
        # fixed grid-step overhead for realistic WaveGlow shapes).
        budget = max(1, cap_bytes // max(1, C * TT * dtype_bytes))
        Bblk = min(B, budget, 16)          # 16 keeps the in-kernel unroll small
        if Bblk >= B and B > 1:
            Bblk = (B + 1) // 2            # keep >= 2 steps so both v7x TCs get work
    nB = pl.cdiv(B, Bblk)
    return Bblk, TT, nB, nT


def invertible_1x1_conv(z, W, reverse=False, W_inverse=None, cap_bytes=2 << 20):
    """Forward pass of Invertible1x1Conv.

    z: (B, C, T)   float32 or bfloat16
    W: (C, C)      orthogonal weight (kept in float32 inside the kernel)
    W_inverse:     optional precomputed inverse for the reverse path (cache it
                   once per session, like the PyTorch module's self.W_inverse).
    Returns (z_out, log_det_W) if reverse=False else z_out.
    """
    B, C, T = z.shape

    if reverse:
        # Tiny CxC inverse; hoist/cache it outside autoregressive loops.
        W_use = jnp.linalg.inv(W) if W_inverse is None else W_inverse
    else:
        W_use = W
    # Keep the weight in float32 regardless of z's dtype: casting an orthogonal
    # W (or its inverse) to bf16 costs ~3 decimal digits on the round trip.
    W_use = W_use.astype(jnp.float32)

    dtype_bytes = jnp.dtype(z.dtype).itemsize
    Bblk, TT, nB, nT = _choose_tiles(B, C, T, dtype_bytes, cap_bytes)

    cost = pl.CostEstimate(
        flops=2 * B * C * C * T,
        transcendentals=0,
        bytes_accessed=2 * B * C * T * dtype_bytes + C * C * 4,
    )

    out = pl.pallas_call(
        _inv1x1_kernel,
        out_shape=jax.ShapeDtypeStruct((B, C, T), z.dtype),
        grid_spec=pltpu.PrefetchScalarGridSpec(
            num_scalar_prefetch=0,
            grid=(nB, nT),
            in_specs=[
                # W: constant index_map -> stays resident in VMEM.
                pl.BlockSpec((C, C), lambda i, j: (0, 0)),
                # z: one (Bblk, C, TT) lane-dense tile per grid step.
                pl.BlockSpec((Bblk, C, TT), lambda i, j: (i, 0, j)),
            ],
            out_specs=pl.BlockSpec((Bblk, C, TT), lambda i, j: (i, 0, j)),
        ),
        compiler_params=pltpu.CompilerParams(
            dimension_semantics=("parallel", "parallel"),
        ),
        cost_estimate=cost,
    )(W_use, z)

    if reverse:
        return out

    # TODO(synk): torch.logdet of the tiny CxC weight has no clean Pallas
    # equivalent; computed on the host side in plain JAX (slogdet; NaN for
    # det < 0 matches torch.logdet, and the init guarantees det > 0).
    sign, logabs = jnp.linalg.slogdet(W.astype(jnp.float32))
    log_det = jnp.where(sign < 0, jnp.nan, logabs)
    log_det_W = (B * T) * log_det
    return out, log_det_W


def make_weight(c, key):
    """Deterministic init matching the module: QR of a normal matrix, det > 0."""
    A = jax.random.normal(key, (c, c), dtype=jnp.float32)
    Q, _ = jnp.linalg.qr(A)
    det = jnp.linalg.det(Q)
    Q = Q.at[:, 0].set(jnp.where(det < 0, -Q[:, 0], Q[:, 0]))
    return Q


if __name__ == "__main__":
    key = jax.random.PRNGKey(0)
    k_w, k_z = jax.random.split(key)

    # batch, group_size (channels), n_of_groups (time)
    B, C, T = 2, 8, 512
    W = make_weight(C, k_w)
    z = jax.random.normal(k_z, (B, C, T), dtype=jnp.float32)

    # --- f32 forward ---
    z_out, log_det_W = invertible_1x1_conv(z, W, reverse=False)
    z_out = jax.block_until_ready(z_out)
    log_det_W = jax.block_until_ready(log_det_W)

    ref = jnp.einsum("ij,bjt->bit", W, z)
    assert jnp.allclose(z_out, ref, atol=1e-5, rtol=1e-5)

    sign_ref, logabs_ref = jnp.linalg.slogdet(W)
    assert jnp.allclose(log_det_W, B * T * logabs_ref, atol=1e-3)

    # --- reverse path with cached inverse (round trip) ---
    W_inv = jnp.linalg.inv(W)  # computed once, like the module's self.W_inverse
    z_back = jax.block_until_ready(
        invertible_1x1_conv(z_out, W, reverse=True, W_inverse=W_inv)
    )
    assert jnp.allclose(z_back, z, atol=1e-4, rtol=1e-4)

    # --- bf16 I/O path (halves HBM traffic; W stays f32, accumulation f32) ---
    z_bf16 = z.astype(jnp.bfloat16)
    out_bf16, _ = invertible_1x1_conv(z_bf16, W, reverse=False)
    out_bf16 = jax.block_until_ready(out_bf16)
    assert out_bf16.dtype == jnp.bfloat16
    assert jnp.allclose(out_bf16.astype(jnp.float32), ref, atol=1e-1, rtol=1e-1)

    # --- T not a multiple of 128, B not a multiple of the batch block ---
    z_odd = jax.random.normal(k_z, (3, C, 200), dtype=jnp.float32)
    out_odd, _ = invertible_1x1_conv(z_odd, W, reverse=False)
    out_odd = jax.block_until_ready(out_odd)
    assert jnp.allclose(
        out_odd, jnp.einsum("ij,bjt->bit", W, z_odd), atol=1e-5, rtol=1e-5
    )

    # --- ragged cdiv time grid (small cap forces TT=256 over T=600) ---
    z_rag = jax.random.normal(k_z, (2, C, 600), dtype=jnp.float32)
    out_rag, _ = invertible_1x1_conv(z_rag, W, reverse=False, cap_bytes=8 * 1024)
    out_rag = jax.block_until_ready(out_rag)
    assert jnp.allclose(
        out_rag, jnp.einsum("ij,bjt->bit", W, z_rag), atol=1e-5, rtol=1e-5
    )

    print("KERNEL_OK")
</pallas_src>

<mosaic_0001>
module attributes {stable_mosaic.version = 11 : i64} {
  func.func @_inv1x1_kernel(%arg0: i32, %arg1: i32, %arg2: memref<8x8xf32, #tpu.memory_space<vmem>>, %arg3: memref<1x8x512xf32, #tpu.memory_space<vmem>>, %arg4: memref<1x8x512xf32, #tpu.memory_space<vmem>>) attributes {dimension_semantics = [#tpu.dimension_semantics<parallel>, #tpu.dimension_semantics<parallel>], iteration_bounds = array<i64: 2, 1>, scalar_prefetch = 0 : i64, scratch_operands = 0 : i64, tpu.core_type = #tpu.core_type<tc>, window_params = [{pipeline_mode = #tpu.pipeline_mode<synchronous>, transform_indices = @transform_0, window_bounds = array<i64: 8, 8>}, {transform_indices = @transform_1, window_bounds = array<i64: 1, 8, 512>}, {transform_indices = @transform_2, window_bounds = array<i64: 1, 8, 512>}]} {
    %c0 = arith.constant 0 : index
    %c0_0 = arith.constant 0 : index
    %0 = vector.load %arg2[%c0, %c0_0] : memref<8x8xf32, #tpu.memory_space<vmem>>, vector<8x8xf32>
    %c0_1 = arith.constant 0 : index
    %c0_2 = arith.constant 0 : index
    %c0_3 = arith.constant 0 : index
    %1 = vector.load %arg3[%c0_1, %c0_2, %c0_3] : memref<1x8x512xf32, #tpu.memory_space<vmem>>, vector<1x8x512xf32>
    %2 = vector.shape_cast %1 : vector<1x8x512xf32> to vector<8x512xf32>
    %cst = arith.constant dense<0.000000e+00> : vector<8x512xf32>
    %3 = tpu.matmul %0, %2, %cst {dimension_numbers = #tpu.dot_dimension_numbers<[1], [0], [0], [1], [0, 0, 1, 1], [], []>} : vector<8x8xf32>, vector<8x512xf32>, vector<8x512xf32> -> vector<8x512xf32>
    %c0_4 = arith.constant 0 : index
    %c0_5 = arith.constant 0 : index
    %c0_6 = arith.constant 0 : index
    %4 = vector.load %arg4[%c0_4, %c0_5, %c0_6] : memref<1x8x512xf32, #tpu.memory_space<vmem>>, vector<1x8x512xf32>
    %5 = vector.shape_cast %4 : vector<1x8x512xf32> to vector<8x512xf32>
    %6 = vector.shape_cast %3 : vector<8x512xf32> to vector<1x8x512xf32>
    tpu.vector_store %arg4[%c0_4, %c0_5, %c0_6], %6 {strides = array<i32>} : memref<1x8x512xf32, #tpu.memory_space<vmem>>, vector<1x8x512xf32>,
    return
  }
  func.func @transform_0(%arg0: i32, %arg1: i32) -> (i32, i32) {
    %c0_i32 = arith.constant 0 : i32
    %c0_i32_0 = arith.constant 0 : i32
    %c0_i32_1 = arith.constant 0 : i32
    return %c0_i32, %c0_i32_0 : i32, i32
  }
  func.func @transform_1(%arg0: i32, %arg1: i32) -> (i32, i32, i32) {
    %c0_i32 = arith.constant 0 : i32
    %c0_i32_0 = arith.constant 0 : i32
    return %arg0, %c0_i32, %arg1 : i32, i32, i32
  }
  func.func @transform_2(%arg0: i32, %arg1: i32) -> (i32, i32, i32) {
    %c0_i32 = arith.constant 0 : i32
    %c0_i32_0 = arith.constant 0 : i32
    return %arg0, %c0_i32, %arg1 : i32, i32, i32
  }
}

</mosaic_0001>

<llo_original>
// kernel: tpu_custom_call.1
$region0: #{tpu_custom_call.1}
  #allocation0 [shape = 'u32[]', space=smem, size = 0x4, offset = 0x4, fixed_abs, tag = 'smem constant byte address 0x4 - core index']
  #allocation1 [shape = 'u32[72,128]{1,0:T(1,128)}', space=vmem, size = 0x9000, scoped, tag = 'internal scratch']
  %s0 = inlined_call_operand.hbm [shape: f32[8,8], index: 0, kind: input, shape index: {}]
  %s1 = inlined_call_operand.hbm [shape: f32[2,8,512], index: 1, kind: input, shape index: {}]
  %s2 = inlined_call_operand.hbm [shape: f32[2,8,512], index: 2, kind: output, shape index: {}]
  %s3 = sld [smem:[#allocation0]]
  $region49: #{tpu_custom_call.1} parent=0
    _
  %s5 = ssub.s32 1, %s3
  %s6 = scalar_select 0, %s5, %s3
  $region1: #{tpu_custom_call.1} parent=0
    #allocation2 [shape = 'u8[4096]{0}', space=vmem, size = 0x1000, scoped, tag = 'input window, operand 0, single buffered']
    #allocation3 [shape = 's32[2]{0}', space=sflag, size = 0x8, scoped, tag = 'scoped memory for tpu_custom_call.1']
    #allocation4 [shape = 's32[2]{0}', space=sflag, size = 0x8, scoped, tag = 'scoped memory for tpu_custom_call.1']
    #allocation5 [shape = 'u8[32768]{0}', space=vmem, size = 0x8000, scoped, tag = 'input window, operand 1']
    #allocation6 [shape = 's32[2]{0}', space=sflag, size = 0x8, scoped, tag = 'scoped memory for tpu_custom_call.1']
    #allocation7 [shape = 'u8[32768]{0}', space=vmem, size = 0x8000, scoped, tag = 'output window, operand 0']
    %7 = vsyncpa [#allocation3], 0
    %8 = vsyncpa [#allocation6], 0
    %s9 = scalar_lea.sflag [#allocation6], 1
    %10 = vsyncpa %s9, 0
    %11 = vsyncpa [#allocation4], 0
    %s12 = scalar_lea.sflag [#allocation4], 1
    %13 = vsyncpa %s12, 0
    loop: start=0, step=1, limit=4
    $region2: #{tpu_custom_call.1} parent=1 // loop_pre_header
      _
    $region3: #{tpu_custom_call.1} parent=1 // loop_header
      %s15 = sphi 0, %s19
      %p16 = scmp.ge.s32.totalorder %s15, 4
      %s22 = sphi 0, %s34
      %s23 = sphi 0, %s30
      %s24 = sphi 0, %s22
      %s25 = sphi 0, %s23
      %s26 = sphi 0, %s24
      %s27 = sphi 0, %s25
      %s35 = sphi 0, %s35
      %s37 = sphi 0, %s35
      %s38 = sphi 0, %s37
      %s52 = sphi 0, %s38
      %s60 = sphi 0, %s62
      %s63 = sphi 0, %s60
      %s64 = sphi 0, %s63
      %s80 = sphi 0, %s64
      %s88 = sphi 0, %s90
      %s91 = sphi 0, %s88
      %s92 = sphi 0, %s91
      %s108 = sphi 0, %s92
    $region4: #{tpu_custom_call.1} parent=1 // loop_header_branch
      %18 = sbr.rel (%p16) target = $region8
    $region5: #{tpu_custom_call.1} parent=1 // loop_body
      %s20 = ssub.s32 %s15, 1
      %s21 = ssub.s32 %s15, 2
      %s28 = sadd.s32 1, %s23
      %p29 = scmp.ge.s32.totalorder %s28, 1
      %s30 = scalar_select %p29, 0, %s28
      %s31 = sadd.s32 1, %s22
      %s32 = scalar_select %p29, %s31, %s22
      %p33 = scmp.ge.s32.totalorder %s32, 2
      %s34 = scalar_select %p33, 0, %s32
      %s36 = sadd.s32 %s35, 1
      %p39 = scmp.eq.s32.totalorder %s15, 1
      %p40 = scmp.ne.s32.totalorder %s35, %s37
      %p41 = scmp.eq.s32.totalorder %s15, 0
      %p42 = por %p40, %p41
      %p43 = scmp.ne.s32.totalorder %s35, %s37
      %p44 = scmp.eq.s32.totalorder %s20, 1
      %p45 = por %p43, %p44
      %p46 = scmp.ne.s32.totalorder %s37, %s38
      %p47 = scmp.eq.s32.totalorder %s20, 0
      %p48 = por %p46, %p47
      %p49 = scmp.ne.s32.totalorder %s37, %s38
      %p50 = scmp.eq.s32.totalorder %s21, 1
      %p51 = por %p49, %p50
      %p53 = scmp.ne.s32.totalorder %s38, %s52
      %p54 = scmp.eq.s32.totalorder %s21, 0
      %p55 = por %p53, %p54
      %s56 = ssub.s32 %s22, %s34
      %s57 = ssub.s32 %s23, %s30
      %s58 = sor.u32 %s56, %s57
      %p59 = scmp.eq.s32.totalorder %s58, 0
      %s61 = sadd.s32 %s60, 1
      %s62 = scalar_select %p59, %s60, %s61
      %p65 = pneg %p59
      %p66 = scmp.eq.s32.totalorder %s15, 1
      %p67 = por %p65, %p66
      %p68 = scmp.ne.s32.totalorder %s60, %s63
      %p69 = scmp.eq.s32.totalorder %s15, 0
      %p70 = por %p68, %p69
      %p71 = scmp.ne.s32.totalorder %s60, %s63
      %p72 = scmp.eq.s32.totalorder %s20, 1
      %p73 = por %p71, %p72
      %p74 = scmp.ne.s32.totalorder %s63, %s64
      %p75 = scmp.eq.s32.totalorder %s20, 0
      %p76 = por %p74, %p75
      %p77 = scmp.ne.s32.totalorder %s63, %s64
      %p78 = scmp.eq.s32.totalorder %s21, 1
      %p79 = por %p77, %p78
      %p81 = scmp.ne.s32.totalorder %s64, %s80
      %p82 = scmp.eq.s32.totalorder %s21, 0
      %p83 = por %p81, %p82
      %s84 = ssub.s32 %s22, %s34
      %s85 = ssub.s32 %s23, %s30
      %s86 = sor.u32 %s84, %s85
      %p87 = scmp.eq.s32.totalorder %s86, 0
      %s89 = sadd.s32 %s88, 1
      %s90 = scalar_select %p87, %s88, %s89
      %p93 = pneg %p87
      %p94 = scmp.eq.s32.totalorder %s15, 1
      %p95 = por %p93, %p94
      %p96 = scmp.ne.s32.totalorder %s88, %s91
      %p97 = scmp.eq.s32.totalorder %s15, 0
      %p98 = por %p96, %p97
      %p99 = scmp.ne.s32.totalorder %s88, %s91
      %p100 = scmp.eq.s32.totalorder %s20, 1
      %p101 = por %p99, %p100
      %p102 = scmp.ne.s32.totalorder %s91, %s92
      %p103 = scmp.eq.s32.totalorder %s20, 0
      %p104 = por %p102, %p103
      %p105 = scmp.ne.s32.totalorder %s91, %s92
      %p106 = scmp.eq.s32.totalorder %s21, 1
      %p107 = por %p105, %p106
      %p109 = scmp.ne.s32.totalorder %s92, %s108
      %p110 = scmp.eq.s32.totalorder %s21, 0
      %p111 = por %p109, %p110
      %p112 = scmp.le.s32.totalorder 1, %s15
      %p113 = scmp.lt.s32.totalorder %s15, 3
      %p114 = pnand %p112, %p113
      %p115 = pneg %p114
      // Predicated region
      $region9: #{tpu_custom_call.1} parent=5 // pred_check
        _
      $region10: #{tpu_custom_call.1} parent=5 // pred_check_branch
        %117 = sbr.rel (%p114) target = $region12
      $region11: #{tpu_custom_call.1} parent=5 // pred_region
        %s118 = ssub.s32 %s15, 1
        // Predicated region
        $region13: #{tpu_custom_call.1} parent=11 // pred_check
          %p119 = pneg %p48
        $region14: #{tpu_custom_call.1} parent=11 // pred_check_branch
          %121 = sbr.rel (%p119) target = $region16
        $region15: #{tpu_custom_call.1} parent=11 // pred_region
          %123 = vsyncadd [#allocation3], 0
          %s125 = sshll.u32 %s0, 4
          %s126 = int_to_ptr.hbm [resolvable:$true] %s125
          %s127 = sshll.u32 [#allocation2], 4
          %s128 = int_to_ptr.vmem [resolvable:$true] %s127
          %130 = dma.hbm_to_vmem [thread:$0]  %s126, 128, %s128, [#allocation3]
        $region16: #{tpu_custom_call.1} parent=11 // pred_fallthru
          _
      $region12: #{tpu_custom_call.1} parent=5 // pred_fallthru
        _
      %p131 = scmp.lt.s32.totalorder %s15, 2
      // Predicated region
      $region17: #{tpu_custom_call.1} parent=5 // pred_check
        %p132 = pneg %p131
      $region18: #{tpu_custom_call.1} parent=5 // pred_check_branch
        %134 = sbr.rel (%p132) target = $region20
      $region19: #{tpu_custom_call.1} parent=5 // pred_region
        // Predicated region
        $region21: #{tpu_custom_call.1} parent=19 // pred_check
          %p135 = pneg %p70
        $region22: #{tpu_custom_call.1} parent=19 // pred_check_branch
          %137 = sbr.rel (%p135) target = $region24
        $region23: #{tpu_custom_call.1} parent=19 // pred_region
          %s138 = sand.u32 %s60, 1
          %s139 = scalar_lea.sflag [#allocation6], %s138
          %s140 = sand.u32 %s60, 1
          %s141 = smul.addr %s140, 32
          %s142 = scalar_lea.vmem [#allocation5], %s141
          %s143 = smul.u32 4, %s23
          %145 = vsyncadd %s139, 0
          %s146 = smul.addr %s22, 4
          %s147 = sadd.s32 %s143, %s146
          %s148 = smul.addr %s147, 8
          %s149 = scalar_lea.hbm %s1, %s148
          %s151 = sshll.u32 %s149, 4
          %s152 = int_to_ptr.hbm [resolvable:$true] %s151
          %s153 = sshll.u32 %s142, 4
          %s154 = int_to_ptr.vmem [resolvable:$true] %s153
          %156 = dma.hbm_to_vmem [thread:$0]  %s152, 512, %s154, %s139
        $region24: #{tpu_custom_call.1} parent=19 // pred_fallthru
          _
      $region20: #{tpu_custom_call.1} parent=5 // pred_fallthru
        _
      %p157 = scmp.le.s32.totalorder 1, %s15
      %p158 = scmp.lt.s32.totalorder %s15, 3
      %p159 = pnand %p157, %p158
      %p160 = pneg %p159
      // Predicated region
      $region25: #{tpu_custom_call.1} parent=5 // pred_check
        _
      $region26: #{tpu_custom_call.1} parent=5 // pred_check_branch
        %162 = sbr.rel (%p159) target = $region28
      $region27: #{tpu_custom_call.1} parent=5 // pred_region
        %s163 = ssub.s32 %s15, 1
        // Predicated region
        $region29: #{tpu_custom_call.1} parent=27 // pred_check
          %p164 = pneg %p48
        $region30: #{tpu_custom_call.1} parent=27 // pred_check_branch
          %166 = sbr.rel (%p164) target = $region32
        $region31: #{tpu_custom_call.1} parent=27 // pred_region
          %168 = dma.done [#allocation3], 128
        $region32: #{tpu_custom_call.1} parent=27 // pred_fallthru
          _
        %s169 = sand.u32 %s63, 1
        %s170 = scalar_lea.sflag [#allocation6], %s169
        %s171 = sand.u32 %s63, 1
        %s172 = smul.addr %s171, 32
        %s173 = scalar_lea.vmem [#allocation5], %s172
        // Predicated region
        $region33: #{tpu_custom_call.1} parent=27 // pred_check
          %p174 = pneg %p76
        $region34: #{tpu_custom_call.1} parent=27 // pred_check_branch
          %176 = sbr.rel (%p174) target = $region36
        $region35: #{tpu_custom_call.1} parent=27 // pred_region
          %178 = dma.done %s170, 512
        $region36: #{tpu_custom_call.1} parent=27 // pred_fallthru
          _
        %p179 = pneg %p48
        %p180 = pneg %p45
        %s181 = sand.u32 %s63, 1
        %s182 = scalar_lea.sflag [#allocation6], %s181
        %s183 = sand.u32 %s63, 1
        %s184 = smul.addr %s183, 32
        %s185 = scalar_lea.vmem [#allocation5], %s184
        %p186 = pneg %p76
        %p187 = pneg %p73
        %p188 = pneg %p104
        %p189 = pneg %p101
        %s190 = sand.u32 %s91, 1
        %s191 = scalar_lea.sflag [#allocation4], %s190
        %s192 = sand.u32 %s91, 1
        %s193 = smul.addr %s192, 32
        %s194 = scalar_lea.vmem [#allocation7], %s193
        %s195 = smul.u32 4, %s25
        %s196 = smul.u32 4, %s25
        %v197 = vld [vmem:[#allocation2] sm:$0xff]
        %v198 = vld [vmem:[%s173] sm:$0xff]
        %v199 = vld [vmem:[%s173 + $0x8] sm:$0xff]
        %v200 = vld [vmem:[%s173 + $0x10] sm:$0xff]
        %v201 = vld [vmem:[%s173 + $0x18] sm:$0xff]
        %vm202 = vcmask 64512
        %v204 = vsel %vm202, %v197, 0
        %206 = vmatpush.msra.mxu0 0.0
        %207 = vmatpush.msra.mxu0 0.0
        %208 = vmatpush.msra.mxu0 0.0
        %209 = vmatpush.msra.mxu0 0.0
        %210 = vmatpush.msra.mxu0 0.0
        %211 = vmatpush.msra.mxu0 0.0
        %212 = vmatpush.msra.mxu0 0.0
        %213 = vmatpush.msra.mxu0 0.0
        %214 = vmatpush.msra.mxu0 0.0
        %215 = vmatpush.msra.mxu0 0.0
        %216 = vmatpush.msra.mxu0 0.0
        %217 = vmatpush.msra.mxu0 0.0
        %218 = vmatpush.msra.mxu0 0.0
        %219 = vmatpush.msra.mxu0 0.0
        %220 = vmatpush.msra.mxu0 0.0
        %221 = vmatpush.msra.mxu0 %v198
        %222 = vmatmul.f32.gmra.mxu0 %v204
        %v223 = vpop.f32.mrf.mxu0
        %v224 = vadd.f32 0.0, %v223
        %225 = vdwg.mxu0
        %226 = vmatpush.msra.mxu0 0.0
        %227 = vmatpush.msra.mxu0 0.0
        %228 = vmatpush.msra.mxu0 0.0
        %229 = vmatpush.msra.mxu0 0.0
        %230 = vmatpush.msra.mxu0 0.0
        %231 = vmatpush.msra.mxu0 0.0
        %232 = vmatpush.msra.mxu0 0.0
        %233 = vmatpush.msra.mxu0 0.0
        %234 = vmatpush.msra.mxu0 0.0
        %235 = vmatpush.msra.mxu0 0.0
        %236 = vmatpush.msra.mxu0 0.0
        %237 = vmatpush.msra.mxu0 0.0
        %238 = vmatpush.msra.mxu0 0.0
        %239 = vmatpush.msra.mxu0 0.0
        %240 = vmatpush.msra.mxu0 0.0
        %241 = vmatpush.msra.mxu0 %v199
        %242 = vmatmul.f32.gmra.mxu0 %v204
        %v243 = vpop.f32.mrf.mxu0
        %v244 = vadd.f32 0.0, %v243
        %245 = vdwg.mxu0
        %246 = vmatpush.msra.mxu0 0.0
        %247 = vmatpush.msra.mxu0 0.0
        %248 = vmatpush.msra.mxu0 0.0
        %249 = vmatpush.msra.mxu0 0.0
        %250 = vmatpush.msra.mxu0 0.0
        %251 = vmatpush.msra.mxu0 0.0
        %252 = vmatpush.msra.mxu0 0.0
        %253 = vmatpush.msra.mxu0 0.0
        %254 = vmatpush.msra.mxu0 0.0
        %255 = vmatpush.msra.mxu0 0.0
        %256 = vmatpush.msra.mxu0 0.0
        %257 = vmatpush.msra.mxu0 0.0
        %258 = vmatpush.msra.mxu0 0.0
        %259 = vmatpush.msra.mxu0 0.0
        %260 = vmatpush.msra.mxu0 0.0
        %261 = vmatpush.msra.mxu0 %v200
        %262 = vmatmul.f32.gmra.mxu0 %v204
        %v263 = vpop.f32.mrf.mxu0
        %v264 = vadd.f32 0.0, %v263
        %265 = vdwg.mxu0
        %266 = vmatpush.msra.mxu0 0.0
        %267 = vmatpush.msra.mxu0 0.0
        %268 = vmatpush.msra.mxu0 0.0
        %269 = vmatpush.msra.mxu0 0.0
        %270 = vmatpush.msra.mxu0 0.0
        %271 = vmatpush.msra.mxu0 0.0
        %272 = vmatpush.msra.mxu0 0.0
        %273 = vmatpush.msra.mxu0 0.0
        %274 = vmatpush.msra.mxu0 0.0
        %275 = vmatpush.msra.mxu0 0.0
        %276 = vmatpush.msra.mxu0 0.0
        %277 = vmatpush.msra.mxu0 0.0
        %278 = vmatpush.msra.mxu0 0.0
        %279 = vmatpush.msra.mxu0 0.0
        %280 = vmatpush.msra.mxu0 0.0
        %281 = vmatpush.msra.mxu0 %v201
        %282 = vmatmul.f32.gmra.mxu0 %v204
        %v283 = vpop.f32.mrf.mxu0
        %v284 = vadd.f32 0.0, %v283
        %285 = vdwg.mxu0
        %286 = vst [vmem:[%s194] sm:$0xff] %v224
        %287 = vst [vmem:[%s194 + $0x8] sm:$0xff] %v244
        %288 = vst [vmem:[%s194 + $0x10] sm:$0xff] %v264
        %289 = vst [vmem:[%s194 + $0x18] sm:$0xff] %v284
        %s290 = sand.u32 %s91, 1
        %s291 = scalar_lea.sflag [#allocation4], %s290
        %s292 = sand.u32 %s91, 1
        %s293 = smul.addr %s292, 32
        %s294 = scalar_lea.vmem [#allocation7], %s293
        // Predicated region
        $region37: #{tpu_custom_call.1} parent=27 // pred_check
          %p295 = pneg %p101
        $region38: #{tpu_custom_call.1} parent=27 // pred_check_branch
          %297 = sbr.rel (%p295) target = $region40
        $region39: #{tpu_custom_call.1} parent=27 // pred_region
          %s298 = smul.u32 4, %s25
          %300 = vsyncadd %s291, 0
          %s301 = smul.addr %s24, 4
          %s302 = sadd.s32 %s298, %s301
          %s303 = smul.addr %s302, 8
          %s304 = scalar_lea.hbm %s2, %s303
          %s306 = sshll.u32 %s294, 4
          %s307 = int_to_ptr.vmem [resolvable:$true] %s306
          %s308 = sshll.u32 %s304, 4
          %s309 = int_to_ptr.hbm [resolvable:$true] %s308
          %311 = dma.vmem_to_hbm [thread:$0]  %s307, 512, %s309, %s291
        $region40: #{tpu_custom_call.1} parent=27 // pred_fallthru
          _
      $region28: #{tpu_custom_call.1} parent=5 // pred_fallthru
        _
      %p312 = scmp.le.s32.totalorder 2, %s15
      // Predicated region
      $region41: #{tpu_custom_call.1} parent=5 // pred_check
        %p313 = pneg %p312
      $region42: #{tpu_custom_call.1} parent=5 // pred_check_branch
        %315 = sbr.rel (%p313) target = $region44
      $region43: #{tpu_custom_call.1} parent=5 // pred_region
        %s316 = ssub.s32 %s15, 2
        // Predicated region
        $region45: #{tpu_custom_call.1} parent=43 // pred_check
          %p317 = pneg %p107
        $region46: #{tpu_custom_call.1} parent=43 // pred_check_branch
          %319 = sbr.rel (%p317) target = $region48
        $region47: #{tpu_custom_call.1} parent=43 // pred_region
          %s320 = sand.u32 %s92, 1
          %s321 = scalar_lea.sflag [#allocation4], %s320
          %s322 = sand.u32 %s92, 1
          %s323 = smul.addr %s322, 32
          %s324 = scalar_lea.vmem [#allocation7], %s323
          %326 = dma.done %s321, 512
        $region48: #{tpu_custom_call.1} parent=43 // pred_fallthru
          _
      $region44: #{tpu_custom_call.1} parent=5 // pred_fallthru
        _
    $region6: #{tpu_custom_call.1} parent=1 // loop_footer
      %s19 = sadd.s32 1, %s15
    $region7: #{tpu_custom_call.1} parent=1 // loop_footer_branch
      %14 = sbr.rel target = $region3
    $region8: #{tpu_custom_call.1} parent=1 // loop_exit
      _
    %327 = vsyncpa [#allocation3], 1
    %s328 = scalar_lea.sflag [#allocation3], 1
    %329 = vsyncpa %s328, 1
    %330 = vsyncpa [#allocation6], 1
    %s331 = scalar_lea.sflag [#allocation6], 1
    %332 = vsyncpa %s331, 1
    %333 = vsyncpa [#allocation4], 1
    %s334 = scalar_lea.sflag [#allocation4], 1
    %335 = vsyncpa %s334, 1

</llo_original>
